<compile_context>
chip_gen: v5e
topology: v5e:2x2
jax: 0.10.0
libtpu: 0.0.40
codegen_flags: <defaults>
</compile_context>

<pallas_src>
import functools

import jax
import jax.numpy as jnp
from jax.experimental import pallas as pl
from jax.experimental.pallas import tpu as pltpu


LANE = 128                    # TPU lane width; output dim is padded to this
_FUSED_VMEM_BUDGET = 4 << 20  # below this footprint use the single fused kernel


def _round_up(x, m):
    return ((x + m - 1) // m) * m


# ---------------------------------------------------------------------------
# Fused path: all three (x @ W + b) inside ONE kernel body / ONE pallas_call.
# ---------------------------------------------------------------------------
def _make_fused_kernel(n_groups):
    def kernel(*refs):
        ins, outs = refs[:3 * n_groups], refs[3 * n_groups:]
        for g in range(n_groups):               # unrolled at trace time
            x = ins[3 * g][...]
            w = ins[3 * g + 1][...]
            b = ins[3 * g + 2][...]
            acc = jnp.dot(x, w, preferred_element_type=jnp.float32)
            outs[g][...] = (acc + b).astype(outs[g].dtype)
    return kernel


def _fused_linears(groups):
    """groups: list of (x [M,K], w_t [K,O], b [1,O]); one pallas_call total."""
    n = len(groups)
    flat, out_shapes = [], []
    for x, w_t, b in groups:
        flat += [x, w_t, b]
        out_shapes.append(
            jax.ShapeDtypeStruct((x.shape[0], w_t.shape[1]), x.dtype))
    vmem = functools.partial(pl.BlockSpec, memory_space=pltpu.MemorySpace.VMEM)
    return pl.pallas_call(
        _make_fused_kernel(n),
        out_shape=tuple(out_shapes),
        in_specs=[vmem() for _ in range(3 * n)],
        out_specs=tuple(vmem() for _ in range(n)),
    )(*flat)


# ---------------------------------------------------------------------------
# Row-tiled path for large node/edge counts (not exercised by the tiny demo).
# ---------------------------------------------------------------------------
def _linear_kernel(x_ref, w_ref, b_ref, o_ref):
    o_ref[...] = (
        jnp.dot(x_ref[...], w_ref[...], preferred_element_type=jnp.float32)
        + b_ref[...]
    ).astype(o_ref.dtype)


def _tiled_linear(x, w_t, b2, *, tile_m=512):
    """y = x @ w_t + b2, tiled over rows; W/b stay resident across the grid."""
    M, K = x.shape
    O = w_t.shape[1]
    tm = M if M <= tile_m else max(8, (tile_m // 8) * 8)
    itemsize = jnp.dtype(x.dtype).itemsize
    # 2x double-buffered x/out tiles + resident W,b, with headroom; keep well
    # under v7x's 64 MiB VMEM (v5e/v6e have 128 MiB physical, 16/32 MiB scoped
    # defaults — so we set the limit explicitly).
    need = 2 * (tm * K + tm * O) * itemsize + (K * O + O) * 4
    vmem_limit = int(min(48 << 20, max(16 << 20, 2 * need)))
    return pl.pallas_call(
        _linear_kernel,
        out_shape=jax.ShapeDtypeStruct((M, O), x.dtype),
        grid=(pl.cdiv(M, tm),),
        in_specs=[
            pl.BlockSpec((tm, K), lambda i: (i, 0)),   # row tile of x
            pl.BlockSpec((K, O), lambda i: (0, 0)),    # W resident
            pl.BlockSpec((1, O), lambda i: (0, 0)),    # bias resident
        ],
        out_specs=pl.BlockSpec((tm, O), lambda i: (i, 0)),
        compiler_params=pltpu.CompilerParams(
            dimension_semantics=("parallel",),   # shard rows across TCs (v7x)
            vmem_limit_bytes=vmem_limit,
        ),
    )(x, w_t, b2)


# ---------------------------------------------------------------------------
# Jitted forward (single dispatched program).
# ---------------------------------------------------------------------------
@functools.partial(jax.jit, static_argnames=("hidden", "tile_m"))
def _graph_independent_forward(params, nodes, edge_attr, context, *,
                               hidden, tile_m=512):
    groups = [
        (nodes, params["wn"], params["bn"]),
        (edge_attr, params["we"], params["be"]),
    ]
    if context is not None:
        groups.append((context, params["wc"], params["bc"]))

    itemsize = jnp.dtype(nodes.dtype).itemsize
    footprint = sum(
        (x.size + w.size + b.size + x.shape[0] * w.shape[1]) * itemsize
        for x, w, b in groups)

    if footprint <= _FUSED_VMEM_BUDGET:         # static-shape decision
        outs = _fused_linears(groups)
    else:
        outs = tuple(_tiled_linear(x, w, b, tile_m=tile_m)
                     for x, w, b in groups)

    # Drop lane padding (a no-op when hidden is already a multiple of 128).
    outs = tuple(o[:, :hidden] for o in outs)
    if context is None:
        return outs[0], outs[1], None
    return outs


class GraphIndependentPallas:
    """GraphIndependent with Linear phi_node / phi_edge / phi_context."""

    def __init__(self, node_dim, edge_dim, ctx_dim, hidden, key):
        kn, ke, kc = jax.random.split(key, 3)
        self.hidden = hidden
        self._o_pad = _round_up(hidden, LANE)

        def init_linear(k, in_dim):
            kw, kb = jax.random.split(k)
            # deterministic init, PyTorch layout (out, in)
            w = jax.random.normal(kw, (hidden, in_dim), jnp.float32) * 0.05
            b = jax.random.normal(kb, (hidden,), jnp.float32) * 0.05
            # Pre-transpose to [K, O_pad] and pre-broadcast bias to [1, O_pad],
            # zero-padded on the output dim for lane-dense stores. Done ONCE.
            w_t = jnp.zeros((in_dim, self._o_pad), jnp.float32)
            w_t = w_t.at[:, :hidden].set(w.T)
            b2 = jnp.zeros((1, self._o_pad), jnp.float32)
            b2 = b2.at[0, :hidden].set(b)
            return w, b, w_t, b2

        self.w_node, self.b_node, wn, bn = init_linear(kn, node_dim)
        self.w_edge, self.b_edge, we, be = init_linear(ke, edge_dim)
        self.w_ctx, self.b_ctx, wc, bc = init_linear(kc, ctx_dim)
        self._params = {"wn": wn, "bn": bn, "we": we, "be": be,
                        "wc": wc, "bc": bc}

    def __call__(self, nodes, edge_attr, edge_index, context=None):
        del edge_index  # GraphIndependent: no message passing
        return _graph_independent_forward(
            self._params, nodes, edge_attr, context, hidden=self.hidden)


if __name__ == "__main__":
    key = jax.random.PRNGKey(0)
    k_nodes, k_edges, k_ctx, k_idx, k_params = jax.random.split(key, 5)

    N_NODES, NODE_DIM = 16, 8
    N_EDGES, EDGE_DIM = 32, 8
    CTX_DIM, HIDDEN = 8, 128     # HIDDEN multiple of 128 -> lane-dense stores

    nodes = jax.random.normal(k_nodes, (N_NODES, NODE_DIM), jnp.float32)
    edge_attr = jax.random.normal(k_edges, (N_EDGES, EDGE_DIM), jnp.float32)
    context = jax.random.normal(k_ctx, (1, CTX_DIM), jnp.float32)
    edge_index = jax.random.randint(k_idx, (2, N_EDGES), 0, N_NODES, jnp.int32)

    model = GraphIndependentPallas(NODE_DIM, EDGE_DIM, CTX_DIM, HIDDEN, k_params)

    node_out, edge_out, context_out = model(nodes, edge_attr, edge_index, context)
    jax.block_until_ready((node_out, edge_out, context_out))

    # Reference check against plain JAX (nn.Linear semantics).
    ref_node = nodes @ model.w_node.T + model.b_node
    ref_edge = edge_attr @ model.w_edge.T + model.b_edge
    ref_ctx = context @ model.w_ctx.T + model.b_ctx
    assert node_out.shape == (N_NODES, HIDDEN)
    assert edge_out.shape == (N_EDGES, HIDDEN)
    assert context_out.shape == (1, HIDDEN)
    assert jnp.allclose(node_out, ref_node, atol=1e-5), "node mismatch"
    assert jnp.allclose(edge_out, ref_edge, atol=1e-5), "edge mismatch"
    assert jnp.allclose(context_out, ref_ctx, atol=1e-5), "context mismatch"

    print("KERNEL_OK")
</pallas_src>

<mosaic_0001>
module attributes {stable_mosaic.version = 11 : i64} {
  func.func @kernel(%arg0: memref<16x8xf32, #tpu.memory_space<vmem>>, %arg1: memref<8x128xf32, #tpu.memory_space<vmem>>, %arg2: memref<1x128xf32, #tpu.memory_space<vmem>>, %arg3: memref<32x8xf32, #tpu.memory_space<vmem>>, %arg4: memref<8x128xf32, #tpu.memory_space<vmem>>, %arg5: memref<1x128xf32, #tpu.memory_space<vmem>>, %arg6: memref<1x8xf32, #tpu.memory_space<vmem>>, %arg7: memref<8x128xf32, #tpu.memory_space<vmem>>, %arg8: memref<1x128xf32, #tpu.memory_space<vmem>>, %arg9: memref<16x128xf32, #tpu.memory_space<vmem>>, %arg10: memref<32x128xf32, #tpu.memory_space<vmem>>, %arg11: memref<1x128xf32, #tpu.memory_space<vmem>>) attributes {dimension_semantics = [], scalar_prefetch = 0 : i64, scratch_operands = 0 : i64, tpu.core_type = #tpu.core_type<tc>} {
    %c0 = arith.constant 0 : index
    %c0_0 = arith.constant 0 : index
    %0 = vector.load %arg0[%c0, %c0_0] : memref<16x8xf32, #tpu.memory_space<vmem>>, vector<16x8xf32>
    %c0_1 = arith.constant 0 : index
    %c0_2 = arith.constant 0 : index
    %1 = vector.load %arg1[%c0_1, %c0_2] : memref<8x128xf32, #tpu.memory_space<vmem>>, vector<8x128xf32>
    %c0_3 = arith.constant 0 : index
    %c0_4 = arith.constant 0 : index
    %2 = vector.load %arg2[%c0_3, %c0_4] : memref<1x128xf32, #tpu.memory_space<vmem>>, vector<1x128xf32>
    %cst = arith.constant dense<0.000000e+00> : vector<16x128xf32>
    %3 = tpu.matmul %0, %1, %cst {dimension_numbers = #tpu.dot_dimension_numbers<[1], [0], [0], [1], [0, 0, 1, 1], [], []>} : vector<16x8xf32>, vector<8x128xf32>, vector<16x128xf32> -> vector<16x128xf32>
    %4 = vector.broadcast %2 : vector<1x128xf32> to vector<16x128xf32>
    %5 = arith.addf %3, %4 : vector<16x128xf32>
    %c0_5 = arith.constant 0 : index
    %c0_6 = arith.constant 0 : index
    %6 = vector.load %arg9[%c0_5, %c0_6] : memref<16x128xf32, #tpu.memory_space<vmem>>, vector<16x128xf32>
    tpu.vector_store %arg9[%c0_5, %c0_6], %5 {strides = array<i32>} : memref<16x128xf32, #tpu.memory_space<vmem>>, vector<16x128xf32>,
    %c0_7 = arith.constant 0 : index
    %c0_8 = arith.constant 0 : index
    %7 = vector.load %arg3[%c0_7, %c0_8] : memref<32x8xf32, #tpu.memory_space<vmem>>, vector<32x8xf32>
    %c0_9 = arith.constant 0 : index
    %c0_10 = arith.constant 0 : index
    %8 = vector.load %arg4[%c0_9, %c0_10] : memref<8x128xf32, #tpu.memory_space<vmem>>, vector<8x128xf32>
    %c0_11 = arith.constant 0 : index
    %c0_12 = arith.constant 0 : index
    %9 = vector.load %arg5[%c0_11, %c0_12] : memref<1x128xf32, #tpu.memory_space<vmem>>, vector<1x128xf32>
    %cst_13 = arith.constant dense<0.000000e+00> : vector<32x128xf32>
    %10 = tpu.matmul %7, %8, %cst_13 {dimension_numbers = #tpu.dot_dimension_numbers<[1], [0], [0], [1], [0, 0, 1, 1], [], []>} : vector<32x8xf32>, vector<8x128xf32>, vector<32x128xf32> -> vector<32x128xf32>
    %11 = vector.broadcast %9 : vector<1x128xf32> to vector<32x128xf32>
    %12 = arith.addf %10, %11 : vector<32x128xf32>
    %c0_14 = arith.constant 0 : index
    %c0_15 = arith.constant 0 : index
    %13 = vector.load %arg10[%c0_14, %c0_15] : memref<32x128xf32, #tpu.memory_space<vmem>>, vector<32x128xf32>
    tpu.vector_store %arg10[%c0_14, %c0_15], %12 {strides = array<i32>} : memref<32x128xf32, #tpu.memory_space<vmem>>, vector<32x128xf32>,
    %c0_16 = arith.constant 0 : index
    %c0_17 = arith.constant 0 : index
    %14 = vector.load %arg6[%c0_16, %c0_17] : memref<1x8xf32, #tpu.memory_space<vmem>>, vector<1x8xf32>
    %c0_18 = arith.constant 0 : index
    %c0_19 = arith.constant 0 : index
    %15 = vector.load %arg7[%c0_18, %c0_19] : memref<8x128xf32, #tpu.memory_space<vmem>>, vector<8x128xf32>
    %c0_20 = arith.constant 0 : index
    %c0_21 = arith.constant 0 : index
    %16 = vector.load %arg8[%c0_20, %c0_21] : memref<1x128xf32, #tpu.memory_space<vmem>>, vector<1x128xf32>
    %cst_22 = arith.constant dense<0.000000e+00> : vector<1x128xf32>
    %17 = tpu.matmul %14, %15, %cst_22 {dimension_numbers = #tpu.dot_dimension_numbers<[1], [0], [0], [1], [0, 0, 1, 1], [], []>} : vector<1x8xf32>, vector<8x128xf32>, vector<1x128xf32> -> vector<1x128xf32>
    %18 = arith.addf %17, %16 : vector<1x128xf32>
    %c0_23 = arith.constant 0 : index
    %c0_24 = arith.constant 0 : index
    %19 = vector.load %arg11[%c0_23, %c0_24] : memref<1x128xf32, #tpu.memory_space<vmem>>, vector<1x128xf32>
    tpu.vector_store %arg11[%c0_23, %c0_24], %18 {strides = array<i32>} : memref<1x128xf32, #tpu.memory_space<vmem>>, vector<1x128xf32>,
    return
  }
}

</mosaic_0001>

<llo_original>
// kernel: _graph_independent_forward.1
$region0: #{_graph_independent_forward.1}
  #allocation0 [shape = 'u32[]', space=smem, size = 0x4, offset = 0x4, fixed_abs, tag = 'smem constant byte address 0x4 - core index']
  #allocation1 [shape = 'u32[72,128]{1,0:T(1,128)}', space=vmem, size = 0x9000, scoped, tag = 'internal scratch']
  %s0 = inlined_call_operand.vmem [shape: f32[16,8], index: 0, kind: input, shape index: {}]
  %s1 = inlined_call_operand.vmem [shape: f32[8,128], index: 1, kind: input, shape index: {}]
  %s2 = inlined_call_operand.vmem [shape: f32[1,128], index: 2, kind: input, shape index: {}]
  %s3 = inlined_call_operand.vmem [shape: f32[32,8], index: 3, kind: input, shape index: {}]
  %s4 = inlined_call_operand.vmem [shape: f32[8,128], index: 4, kind: input, shape index: {}]
  %s5 = inlined_call_operand.vmem [shape: f32[1,128], index: 5, kind: input, shape index: {}]
  %s6 = inlined_call_operand.vmem [shape: f32[1,8], index: 6, kind: input, shape index: {}]
  %s7 = inlined_call_operand.vmem [shape: f32[8,128], index: 7, kind: input, shape index: {}]
  %s8 = inlined_call_operand.vmem [shape: f32[1,128], index: 8, kind: input, shape index: {}]
  %s9 = inlined_call_operand.hbm [shape: f32[16,128], index: 9, kind: output, shape index: {0}]
  %s10 = inlined_call_operand.hbm [shape: f32[32,128], index: 10, kind: output, shape index: {1}]
  %s11 = inlined_call_operand.hbm [shape: f32[1,128], index: 11, kind: output, shape index: {2}]
  %12 = xla_tuple %s9, %s10, %s11
  %s13 = sld [smem:[#allocation0]]
  $region62: #{_graph_independent_forward.1} parent=0
    _
  %s15 = ssub.s32 1, %s13
  %s16 = scalar_select 0, %s15, %s13
  $region1: #{_graph_independent_forward.1} parent=0
    #allocation2 [shape = 'u8[8192]{0}', space=vmem, size = 0x2000, scoped, tag = 'output window, operand 0, single buffered']
    #allocation3 [shape = 's32[1]{0}', space=sflag, size = 0x4, scoped, tag = 'scoped memory for _graph_independent_forward.1']
    #allocation4 [shape = 'u8[16384]{0}', space=vmem, size = 0x4000, scoped, tag = 'output window, operand 1, single buffered']
    #allocation5 [shape = 's32[1]{0}', space=sflag, size = 0x4, scoped, tag = 'scoped memory for _graph_independent_forward.1']
    #allocation6 [shape = 'u8[512]{0}', space=vmem, size = 0x400, scoped, tag = 'output window, operand 2, single buffered']
    %17 = vsyncpa [#allocation3], 0
    %18 = vsyncpa [#allocation5], 0
    // Predicated region
    $region2: #{_graph_independent_forward.1} parent=1 // pred_check
      _
    $region3: #{_graph_independent_forward.1} parent=1 // pred_check_branch
      %20 = sbr.rel (0) target = $region5
    $region4: #{_graph_independent_forward.1} parent=1 // pred_region
      _
    $region5: #{_graph_independent_forward.1} parent=1 // pred_fallthru
      _
    // Predicated region
    $region6: #{_graph_independent_forward.1} parent=1 // pred_check
      _
    $region7: #{_graph_independent_forward.1} parent=1 // pred_check_branch
      %22 = sbr.rel (0) target = $region9
    $region8: #{_graph_independent_forward.1} parent=1 // pred_region
      _
    $region9: #{_graph_independent_forward.1} parent=1 // pred_fallthru
      _
    // Predicated region
    $region10: #{_graph_independent_forward.1} parent=1 // pred_check
      _
    $region11: #{_graph_independent_forward.1} parent=1 // pred_check_branch
      %24 = sbr.rel (0) target = $region13
    $region12: #{_graph_independent_forward.1} parent=1 // pred_region
      _
    $region13: #{_graph_independent_forward.1} parent=1 // pred_fallthru
      _
    // Predicated region
    $region14: #{_graph_independent_forward.1} parent=1 // pred_check
      _
    $region15: #{_graph_independent_forward.1} parent=1 // pred_check_branch
      %26 = sbr.rel (0) target = $region17
    $region16: #{_graph_independent_forward.1} parent=1 // pred_region
      _
    $region17: #{_graph_independent_forward.1} parent=1 // pred_fallthru
      _
    // Predicated region
    $region18: #{_graph_independent_forward.1} parent=1 // pred_check
      _
    $region19: #{_graph_independent_forward.1} parent=1 // pred_check_branch
      %28 = sbr.rel (0) target = $region21
    $region20: #{_graph_independent_forward.1} parent=1 // pred_region
      _
    $region21: #{_graph_independent_forward.1} parent=1 // pred_fallthru
      _
    // Predicated region
    $region22: #{_graph_independent_forward.1} parent=1 // pred_check
      _
    $region23: #{_graph_independent_forward.1} parent=1 // pred_check_branch
      %30 = sbr.rel (0) target = $region25
    $region24: #{_graph_independent_forward.1} parent=1 // pred_region
      _
    $region25: #{_graph_independent_forward.1} parent=1 // pred_fallthru
      _
    // Predicated region
    $region26: #{_graph_independent_forward.1} parent=1 // pred_check
      _
    $region27: #{_graph_independent_forward.1} parent=1 // pred_check_branch
      %32 = sbr.rel (0) target = $region29
    $region28: #{_graph_independent_forward.1} parent=1 // pred_region
      _
    $region29: #{_graph_independent_forward.1} parent=1 // pred_fallthru
      _
    // Predicated region
    $region30: #{_graph_independent_forward.1} parent=1 // pred_check
      _
    $region31: #{_graph_independent_forward.1} parent=1 // pred_check_branch
      %34 = sbr.rel (0) target = $region33
    $region32: #{_graph_independent_forward.1} parent=1 // pred_region
      _
    $region33: #{_graph_independent_forward.1} parent=1 // pred_fallthru
      _
    // Predicated region
    $region34: #{_graph_independent_forward.1} parent=1 // pred_check
      _
    $region35: #{_graph_independent_forward.1} parent=1 // pred_check_branch
      %36 = sbr.rel (0) target = $region37
    $region36: #{_graph_independent_forward.1} parent=1 // pred_region
      _
    $region37: #{_graph_independent_forward.1} parent=1 // pred_fallthru
      _
    %v37 = vld [vmem:[%s0] sm:$0xff]
    %v38 = vld [vmem:[%s0 + $0x8] sm:$0xff]
    %v39 = vld [vmem:[%s1] sm:$0xff]
    %v40 = vld [vmem:[%s2] sm:$0x1]
    %v42 = vperm.slane %v40, 0
    %vm44 = vcmask 64512
    %v46 = vsel %vm44, %v37, 0
    %v49 = vsel %vm44, %v38, 0
    %51 = vmatpush.msra.mxu0 0.0
    %52 = vmatpush.msra.mxu0 0.0
    %53 = vmatpush.msra.mxu0 0.0
    %54 = vmatpush.msra.mxu0 0.0
    %55 = vmatpush.msra.mxu0 0.0
    %56 = vmatpush.msra.mxu0 0.0
    %57 = vmatpush.msra.mxu0 0.0
    %58 = vmatpush.msra.mxu0 0.0
    %59 = vmatpush.msra.mxu0 0.0
    %60 = vmatpush.msra.mxu0 0.0
    %61 = vmatpush.msra.mxu0 0.0
    %62 = vmatpush.msra.mxu0 0.0
    %63 = vmatpush.msra.mxu0 0.0
    %64 = vmatpush.msra.mxu0 0.0
    %65 = vmatpush.msra.mxu0 0.0
    %66 = vmatpush.msra.mxu0 %v39
    %67 = vmatmul.f32.gmra.mxu0 %v46
    %v68 = vpop.f32.mrf.mxu0
    %v69 = vadd.f32 %v42, %v68
    %70 = vmatmul.f32.gmra.mxu0 %v49
    %v71 = vpop.f32.mrf.mxu0
    %v72 = vadd.f32 %v42, %v71
    %73 = vdwg.mxu0
    %74 = vst [vmem:[#allocation2] sm:$0xff] %v69
    %75 = vst [vmem:[#allocation2 + $0x8] sm:$0xff] %v72
    %v76 = vld [vmem:[%s3] sm:$0xff]
    %v77 = vld [vmem:[%s3 + $0x8] sm:$0xff]
    %v78 = vld [vmem:[%s3 + $0x10] sm:$0xff]
    %v79 = vld [vmem:[%s3 + $0x18] sm:$0xff]
    %v80 = vld [vmem:[%s4] sm:$0xff]
    %v81 = vld [vmem:[%s5] sm:$0x1]
    %v83 = vperm.slane %v81, 0
    %v86 = vsel %vm44, %v76, 0
    %v89 = vsel %vm44, %v77, 0
    %v92 = vsel %vm44, %v78, 0
    %v95 = vsel %vm44, %v79, 0
    %97 = vmatpush.msra.mxu0 0.0
    %98 = vmatpush.msra.mxu0 0.0
    %99 = vmatpush.msra.mxu0 0.0
    %100 = vmatpush.msra.mxu0 0.0
    %101 = vmatpush.msra.mxu0 0.0
    %102 = vmatpush.msra.mxu0 0.0
    %103 = vmatpush.msra.mxu0 0.0
    %104 = vmatpush.msra.mxu0 0.0
    %105 = vmatpush.msra.mxu0 0.0
    %106 = vmatpush.msra.mxu0 0.0
    %107 = vmatpush.msra.mxu0 0.0
    %108 = vmatpush.msra.mxu0 0.0
    %109 = vmatpush.msra.mxu0 0.0
    %110 = vmatpush.msra.mxu0 0.0
    %111 = vmatpush.msra.mxu0 0.0
    %112 = vmatpush.msra.mxu0 %v80
    %113 = vmatmul.f32.gmra.mxu0 %v86
    %v114 = vpop.f32.mrf.mxu0
    %v115 = vadd.f32 %v83, %v114
    %116 = vmatmul.f32.gmra.mxu0 %v89
    %v117 = vpop.f32.mrf.mxu0
    %v118 = vadd.f32 %v83, %v117
    %119 = vmatmul.f32.gmra.mxu0 %v92
    %v120 = vpop.f32.mrf.mxu0
    %v121 = vadd.f32 %v83, %v120
    %122 = vmatmul.f32.gmra.mxu0 %v95
    %v123 = vpop.f32.mrf.mxu0
    %v124 = vadd.f32 %v83, %v123
    %125 = vdwg.mxu0
    %126 = vst [vmem:[#allocation4] sm:$0xff] %v115
    %127 = vst [vmem:[#allocation4 + $0x8] sm:$0xff] %v118
    %128 = vst [vmem:[#allocation4 + $0x10] sm:$0xff] %v121
    %129 = vst [vmem:[#allocation4 + $0x18] sm:$0xff] %v124
    %v130 = vld [vmem:[%s6] sm:$0x1]
    %v131 = vld [vmem:[%s7] sm:$0xff]
    %v132 = vld [vmem:[%s8] sm:$0x1]
    %v134 = vsel %vm44, %v130, 0
    %136 = vmatpush.msra.mxu0 0.0
    %137 = vmatpush.msra.mxu0 0.0
    %138 = vmatpush.msra.mxu0 0.0
    %139 = vmatpush.msra.mxu0 0.0
    %140 = vmatpush.msra.mxu0 0.0
    %141 = vmatpush.msra.mxu0 0.0
    %142 = vmatpush.msra.mxu0 0.0
    %143 = vmatpush.msra.mxu0 0.0
    %144 = vmatpush.msra.mxu0 0.0
    %145 = vmatpush.msra.mxu0 0.0
    %146 = vmatpush.msra.mxu0 0.0
    %147 = vmatpush.msra.mxu0 0.0
    %148 = vmatpush.msra.mxu0 0.0
    %149 = vmatpush.msra.mxu0 0.0
    %150 = vmatpush.msra.mxu0 0.0
    %151 = vmatpush.msra.mxu0 %v131
    %152 = vmatmul.f32.gmra.mxu0 %v134
    %v153 = vpop.f32.mrf.mxu0
    %v154 = vadd.f32 %v132, %v153
    %155 = vdwg.mxu0
    %156 = vst [vmem:[#allocation6] sm:$0x1] %v154
    // Predicated region
    $region38: #{_graph_independent_forward.1} parent=1 // pred_check
      _
    $region39: #{_graph_independent_forward.1} parent=1 // pred_check_branch
      %158 = sbr.rel (0) target = $region41
    $region40: #{_graph_independent_forward.1} parent=1 // pred_region
      %160 = vsyncadd [#allocation3], 0
      %s161 = sshll.u32 [#allocation2], 4
      %s162 = int_to_ptr.vmem [resolvable:$true] %s161
      %s163 = sshll.u32 %s9, 4
      %s164 = int_to_ptr.hbm [resolvable:$true] %s163
      %169 = dma.vmem_to_hbm [thread:$0]  %s162, 256, %s164, [#allocation3], 128, 128, 8
    $region41: #{_graph_independent_forward.1} parent=1 // pred_fallthru
      _
    // Predicated region
    $region42: #{_graph_independent_forward.1} parent=1 // pred_check
      _
    $region43: #{_graph_independent_forward.1} parent=1 // pred_check_branch
      %171 = sbr.rel (0) target = $region45
    $region44: #{_graph_independent_forward.1} parent=1 // pred_region
      %173 = vsyncadd [#allocation5], 0
      %s174 = sshll.u32 [#allocation4], 4
      %s175 = int_to_ptr.vmem [resolvable:$true] %s174
      %s176 = sshll.u32 %s10, 4
      %s177 = int_to_ptr.hbm [resolvable:$true] %s176
      %182 = dma.vmem_to_hbm [thread:$0]  %s175, 512, %s177, [#allocation5], 128, 128, 8
    $region45: #{_graph_independent_forward.1} parent=1 // pred_fallthru
      _
    // Predicated region
    $region46: #{_graph_independent_forward.1} parent=1 // pred_check
      _
    $region47: #{_graph_independent_forward.1} parent=1 // pred_check_branch
      %184 = sbr.rel (0) target = $region49
    $region48: #{_graph_independent_forward.1} parent=1 // pred_region
      %186 = vsyncadd [#allocation5], 0
      %s188 = sshll.u32 [#allocation6], 4
      %s189 = int_to_ptr.vmem [resolvable:$true] %s188
      %s190 = sshll.u32 %s11, 4
      %s191 = int_to_ptr.hbm [resolvable:$true] %s190
      %193 = dma.vmem_to_hbm [thread:$0]  %s189, 16, %s191, [#allocation5]
    $region49: #{_graph_independent_forward.1} parent=1 // pred_fallthru
      _
    // Predicated region
    $region50: #{_graph_independent_forward.1} parent=1 // pred_check
      _
    $region51: #{_graph_independent_forward.1} parent=1 // pred_check_branch
      %195 = sbr.rel (0) target = $region53
    $region52: #{_graph_independent_forward.1} parent=1 // pred_region
      %197 = dma.done [#allocation3], 256
    $region53: #{_graph_independent_forward.1} parent=1 // pred_fallthru
      _
    // Predicated region
    $region54: #{_graph_independent_forward.1} parent=1 // pred_check
      _
    $region55: #{_graph_independent_forward.1} parent=1 // pred_check_branch
      %199 = sbr.rel (0) target = $region57
    $region56: #{_graph_independent_forward.1} parent=1 // pred_region
      %201 = dma.done [#allocation5], 512
    $region57: #{_graph_independent_forward.1} parent=1 // pred_fallthru
      _
    // Predicated region
    $region58: #{_graph_independent_forward.1} parent=1 // pred_check
      _
    $region59: #{_graph_independent_forward.1} parent=1 // pred_check_branch
      %203 = sbr.rel (0) target = $region61
    $region60: #{_graph_independent_forward.1} parent=1 // pred_region
      %205 = dma.done [#allocation5], 16
    $region61: #{_graph_independent_forward.1} parent=1 // pred_fallthru
      _
    %206 = vsyncpa [#allocation3], 1
    %207 = vsyncpa [#allocation5], 1

</llo_original>
